<compile_context>
chip_gen: v7x
topology: tpu7x:2x2x1
jax: 0.10.0
libtpu: 0.0.40
codegen_flags: <defaults>
</compile_context>

<pallas_src>
import functools

import jax
import jax.numpy as jnp
from jax import lax
from jax.experimental import pallas as pl
from jax.experimental.pallas import tpu as pltpu


def _round_up(x, m):
    return ((x + m - 1) // m) * m


def _vmem_physical_bytes():
    """Physical per-core VMEM, with a conservative (v7x-sized) fallback."""
    try:
        info = pltpu.get_tpu_info()
        for name in ("vmem_capacity_bytes", "vmem_size_bytes", "vmem_bytes"):
            val = getattr(info, name, None)
            if val:
                return int(val)
    except Exception:
        pass
    return 64 * 1024 * 1024


def _pick_tn(dim_out, tn_max):
    """Pick the output-column tile from {128,256,512} minimizing pad waste."""
    best = None
    for cand in (512, 256, 128):
        if cand > max(tn_max, 128):
            continue
        n_pad = _round_up(dim_out, cand)
        waste = n_pad - dim_out
        if best is None or waste < best[0]:
            best = (waste, cand, n_pad)
    return best[1], best[2]


def _concat_linear_kernel(x_ref, w_ref, cp_ref, o_ref):
    """o = x @ Wx^T + (context @ Wc^T + bias); parenthesized part precomputed (cp)."""
    bb, ts, k = x_ref.shape
    tn = w_ref.shape[0]
    if bb == 1:
        x2 = x_ref[0]                                   # (ts, k)
    else:
        # Leading-dim merge: ts is a sublane multiple, so this is a free relabel.
        x2 = x_ref[...].reshape(bb * ts, k)
    acc = lax.dot_general(                              # MXU, f32 accumulation
        x2, w_ref[...],
        dimension_numbers=(((1,), (1,)), ((), ())),     # contract K; weight is (N, K)
        preferred_element_type=jnp.float32)
    acc = acc.reshape(bb, ts, tn) + cp_ref[...].astype(jnp.float32)
    o_ref[...] = acc.astype(o_ref.dtype)


@functools.partial(jax.jit, static_argnames=("tm", "tn"))
def concat_linear(context, x, weight, bias, *, tm=512, tn=512):
    """Pallas ConcatLinear forward.

    context: (B, 1 + dim_c)
    x:       (B, S, dim_in) or (B, dim_in)
    weight:  (dim_out, dim_in + 1 + dim_c)   (PyTorch nn.Linear layout, not transposed)
    bias:    (dim_out,)

    tm/tn are upper bounds on the row / output-column tile. They are shrunk
    automatically to the dtype sublane multiple, the problem size, and the
    physical VMEM of the running TPU generation; 256-512 row tiles are right
    for v5e, v6e and v7x alike.
    """
    squeeze_seq = (x.ndim == 2)
    dim_in = x.shape[-1]
    dim_out, k_full = weight.shape
    dtype = x.dtype
    itemsize = jnp.dtype(dtype).itemsize
    sub = max(8, 32 // itemsize)                        # dtype-native sublane multiple

    # Fold the tiny (K = 1 + dim_c) context matmul + bias into a per-row f32
    # vector with plain XLA; the kernel then runs only the big GEMM.
    wc = weight[:, dim_in:]                             # (dim_out, 1 + dim_c)  tiny slice
    ctx_proj = (context.astype(jnp.float32) @ jnp.transpose(wc).astype(jnp.float32)
                + bias.astype(jnp.float32))             # (B, dim_out)

    # Output-column tiling: lane-dense tiles, minimal padding waste.
    tn_eff, n_pad = _pick_tn(dim_out, tn)
    n_tiles = n_pad // tn_eff

    # Row tiling: 2-D inputs tile the batch axis directly; 3-D inputs either
    # tile the sequence (long S) or pack several batches per block (short S) so
    # every MXU pass sees a tall LHS instead of S-row slivers.
    if squeeze_seq:
        rows = x.shape[0]
        bb = 1
        ts = _round_up(min(tm, _round_up(rows, sub)), sub)
    else:
        B, S = x.shape[0], x.shape[1]
        s_blk = _round_up(S, sub)
        if s_blk >= tm:
            bb, ts = 1, _round_up(min(tm, s_blk), sub)
        else:
            bb, ts = min(B, max(1, tm // s_blk)), s_blk

    # Exact VMEM budget: double-buffered blocks + f32 accumulator + Mosaic slack.
    w_isize = jnp.dtype(weight.dtype).itemsize
    cap = max(32 << 20, _vmem_physical_bytes() - (16 << 20))

    def _need(bb_, ts_):
        x_blk = bb_ * ts_ * dim_in * itemsize
        w_blk = tn_eff * dim_in * w_isize
        cp_blk = bb_ * (ts_ if squeeze_seq else 1) * tn_eff * 4
        o_blk = bb_ * ts_ * tn_eff * itemsize
        acc = bb_ * ts_ * tn_eff * 4
        return 2 * (x_blk + w_blk + cp_blk + o_blk) + acc + (2 << 20)

    while _need(bb, ts) > cap and (bb > 1 or ts > sub):
        if bb > 1:
            bb = max(1, bb // 2)
        else:
            ts = max(sub, _round_up(ts // 2, sub))
    # TODO(synk): for very large dim_in (earlier on v7x's 64 MiB VMEM), add a
    # trailing "arbitrary" K grid axis with a VMEM f32 accumulator
    # (pl.when init/finalize) instead of shrinking the row tile.
    vmem_limit = int(min(cap, max(_need(bb, ts), 32 << 20)))

    # Weight: keep the native (dim_out, dim_in + 1 + dim_c) layout. Zero-copy
    # pass-through when possible (the block only reads the first dim_in cols).
    if n_pad == dim_out and dim_in % 128 == 0:
        w_arg = weight
    else:
        w_arg = weight[:, :dim_in]
        if n_pad != dim_out:
            w_arg = jnp.pad(w_arg, ((0, n_pad - dim_out), (0, 0)))

    # Kernel operands (pads are no-ops for well-shaped inputs).
    if squeeze_seq:
        rows_pad = _round_up(rows, ts)
        xk = x[None]                                    # (1, rows, dim_in)
        cpk = ctx_proj[None]                            # (1, rows, dim_out)
        if rows_pad != rows:
            xk = jnp.pad(xk, ((0, 0), (0, rows_pad - rows), (0, 0)))
            cpk = jnp.pad(cpk, ((0, 0), (0, rows_pad - rows), (0, 0)))
        b_tiles, s_tiles, cp_ts = 1, rows_pad // ts, ts
        out_shape = (1, rows_pad, n_pad)
        cp_map = lambda b, i, j: (b, i, j)              # per-row ctx_proj
    else:
        s_pad = _round_up(S, ts)
        b_pad = _round_up(B, bb)
        xk = x
        if s_pad != S or b_pad != B:
            xk = jnp.pad(xk, ((0, b_pad - B), (0, s_pad - S), (0, 0)))
        cpk = ctx_proj[:, None, :]                      # (B, 1, dim_out)
        if b_pad != B:
            cpk = jnp.pad(cpk, ((0, b_pad - B), (0, 0), (0, 0)))
        b_tiles, s_tiles, cp_ts = b_pad // bb, s_pad // ts, 1
        out_shape = (b_pad, s_pad, n_pad)
        cp_map = lambda b, i, j: (b, 0, j)              # per-batch ctx_proj (bcast over S)
    if n_pad != dim_out:
        cpk = jnp.pad(cpk, ((0, 0), (0, 0), (0, n_pad - dim_out)))

    # Grid order: rows innermost so the weight tile stays resident (fetched
    # n_tiles times total). With a single N tile the weight never changes, so
    # lead with the longest parallel axis instead for a balanced megacore split.
    if n_tiles > 1:
        grid = (n_tiles, b_tiles, s_tiles)
        reorder = lambda fn: (lambda j, b, i: fn(b, i, j))
    else:
        grid = (b_tiles, s_tiles, n_tiles)
        reorder = lambda fn: (lambda b, i, j: fn(b, i, j))

    in_specs = [
        pl.BlockSpec((bb, ts, dim_in), reorder(lambda b, i, j: (b, i, 0))),
        pl.BlockSpec((tn_eff, dim_in), reorder(lambda b, i, j: (j, 0))),
        pl.BlockSpec((bb, cp_ts, tn_eff), reorder(cp_map)),
    ]
    out_spec = pl.BlockSpec((bb, ts, tn_eff), reorder(lambda b, i, j: (b, i, j)))

    out = pl.pallas_call(
        _concat_linear_kernel,
        out_shape=jax.ShapeDtypeStruct(out_shape, dtype),
        grid_spec=pltpu.PrefetchScalarGridSpec(
            num_scalar_prefetch=0,
            grid=grid,
            in_specs=in_specs,
            out_specs=out_spec,
        ),
        compiler_params=pltpu.CompilerParams(
            dimension_semantics=("parallel", "parallel", "parallel"),
            vmem_limit_bytes=vmem_limit,
        ),
    )(xk, w_arg, cpk)

    if squeeze_seq:
        return out[0, :rows, :dim_out]
    return out[:B, :S, :dim_out]


if __name__ == "__main__":
    # Small shapes consistent with the module's forward.
    B, S = 2, 8
    dim_in, dim_out, dim_c = 32, 32, 3

    key = jax.random.PRNGKey(0)
    kx, kc, kw, kb, kx2, kc2 = jax.random.split(key, 6)

    # Deterministic synthetic "nn.Linear" parameters.
    fan_in = dim_in + 1 + dim_c
    bound = float(fan_in) ** -0.5
    weight = jax.random.uniform(kw, (dim_out, fan_in), dtype=jnp.float32,
                                minval=-bound, maxval=bound)
    bias = jax.random.uniform(kb, (dim_out,), dtype=jnp.float32,
                              minval=-bound, maxval=bound)

    # --- 3-D path: context broadcast over the sequence axis ------------------
    x = jax.random.normal(kx, (B, S, dim_in), dtype=jnp.float32)
    context = jax.random.normal(kc, (B, 1 + dim_c), dtype=jnp.float32)

    out = jax.block_until_ready(concat_linear(context, x, weight, bias))

    ctx_exp = jnp.broadcast_to(context[:, None, :], (B, S, 1 + dim_c))
    ref = jnp.concatenate([x, ctx_exp], axis=2) @ weight.T + bias
    assert out.shape == (B, S, dim_out)
    assert jnp.allclose(out, ref, atol=1e-5, rtol=1e-5)

    # --- 2-D path: per-row context -------------------------------------------
    B2 = 16
    x2 = jax.random.normal(kx2, (B2, dim_in), dtype=jnp.float32)
    context2 = jax.random.normal(kc2, (B2, 1 + dim_c), dtype=jnp.float32)

    out2 = jax.block_until_ready(concat_linear(context2, x2, weight, bias))
    ref2 = jnp.concatenate([x2, context2], axis=1) @ weight.T + bias
    assert out2.shape == (B2, dim_out)
    assert jnp.allclose(out2, ref2, atol=1e-5, rtol=1e-5)

    print("KERNEL_OK")
</pallas_src>

<mosaic_0001>
module attributes {stable_mosaic.version = 11 : i64} {
  func.func @_concat_linear_kernel(%arg0: i32, %arg1: i32, %arg2: i32, %arg3: memref<2x8x32xf32, #tpu.memory_space<vmem>>, %arg4: memref<128x32xf32, #tpu.memory_space<vmem>>, %arg5: memref<2x1x128xf32, #tpu.memory_space<vmem>>, %arg6: memref<2x8x128xf32, #tpu.memory_space<vmem>>) attributes {dimension_semantics = [#tpu.dimension_semantics<parallel>, #tpu.dimension_semantics<parallel>, #tpu.dimension_semantics<parallel>], iteration_bounds = array<i64: 1, 1, 1>, scalar_prefetch = 0 : i64, scratch_operands = 0 : i64, tpu.core_type = #tpu.core_type<tc>, window_params = [{transform_indices = @transform_0, window_bounds = array<i64: 2, 8, 32>}, {transform_indices = @transform_1, window_bounds = array<i64: 128, 32>}, {transform_indices = @transform_2, window_bounds = array<i64: 2, 1, 128>}, {transform_indices = @transform_3, window_bounds = array<i64: 2, 8, 128>}]} {
    %c0 = arith.constant 0 : index
    %c0_0 = arith.constant 0 : index
    %c0_1 = arith.constant 0 : index
    %0 = vector.load %arg3[%c0, %c0_0, %c0_1] : memref<2x8x32xf32, #tpu.memory_space<vmem>>, vector<2x8x32xf32>
    %1 = vector.shape_cast %0 : vector<2x8x32xf32> to vector<16x32xf32>
    %c0_2 = arith.constant 0 : index
    %c0_3 = arith.constant 0 : index
    %2 = vector.load %arg4[%c0_2, %c0_3] : memref<128x32xf32, #tpu.memory_space<vmem>>, vector<128x32xf32>
    %cst = arith.constant dense<0.000000e+00> : vector<16x128xf32>
    %3 = tpu.matmul %1, %2, %cst {dimension_numbers = #tpu.dot_dimension_numbers<[1], [1], [0], [0], [0, 0, 1, 0], [], []>} : vector<16x32xf32>, vector<128x32xf32>, vector<16x128xf32> -> vector<16x128xf32>
    %4 = vector.shape_cast %3 : vector<16x128xf32> to vector<2x8x128xf32>
    %c0_4 = arith.constant 0 : index
    %c0_5 = arith.constant 0 : index
    %c0_6 = arith.constant 0 : index
    %5 = vector.load %arg5[%c0_4, %c0_5, %c0_6] : memref<2x1x128xf32, #tpu.memory_space<vmem>>, vector<2x1x128xf32>
    %6 = vector.broadcast %5 : vector<2x1x128xf32> to vector<2x8x128xf32>
    %7 = arith.addf %4, %6 : vector<2x8x128xf32>
    %c0_7 = arith.constant 0 : index
    %c0_8 = arith.constant 0 : index
    %c0_9 = arith.constant 0 : index
    %8 = vector.load %arg6[%c0_7, %c0_8, %c0_9] : memref<2x8x128xf32, #tpu.memory_space<vmem>>, vector<2x8x128xf32>
    tpu.vector_store %arg6[%c0_7, %c0_8, %c0_9], %7 {strides = array<i32>} : memref<2x8x128xf32, #tpu.memory_space<vmem>>, vector<2x8x128xf32>,
    return
  }
  func.func @transform_0(%arg0: i32, %arg1: i32, %arg2: i32) -> (i32, i32, i32) {
    %c0_i32 = arith.constant 0 : i32
    %c0_i32_0 = arith.constant 0 : i32
    return %arg0, %arg1, %c0_i32 : i32, i32, i32
  }
  func.func @transform_1(%arg0: i32, %arg1: i32, %arg2: i32) -> (i32, i32) {
    %c0_i32 = arith.constant 0 : i32
    %c0_i32_0 = arith.constant 0 : i32
    return %arg2, %c0_i32 : i32, i32
  }
  func.func @transform_2(%arg0: i32, %arg1: i32, %arg2: i32) -> (i32, i32, i32) {
    %c0_i32 = arith.constant 0 : i32
    %c0_i32_0 = arith.constant 0 : i32
    return %arg0, %c0_i32, %arg2 : i32, i32, i32
  }
  func.func @transform_3(%arg0: i32, %arg1: i32, %arg2: i32) -> (i32, i32, i32) {
    %c0_i32 = arith.constant 0 : i32
    return %arg0, %arg1, %arg2 : i32, i32, i32
  }
}

</mosaic_0001>

<llo_original>
// kernel: concat_linear.1
$region0: #{concat_linear.1}
  #allocation0 [shape = 'u32[]', space=smem, size = 0x4, offset = 0x4, fixed_abs, tag = 'smem constant byte address 0x4 - core index']
  #allocation1 [shape = 'u32[144,128]{1,0:T(1,128)}', space=vmem, size = 0x12000, scoped, tag = 'internal scratch']
  %s0 = inlined_call_operand.vmem [shape: f32[2,8,32], index: 0, kind: input, shape index: {}]
  %s1 = inlined_call_operand.vmem [shape: f32[128,32], index: 1, kind: input, shape index: {}]
  %s2 = inlined_call_operand.vmem [shape: f32[2,1,128], index: 2, kind: input, shape index: {}]
  %s3 = inlined_call_operand.hbm [shape: f32[2,8,128], index: 3, kind: output, shape index: {}]
  %s4 = sld [smem:[#allocation0]]
  $region22: #{concat_linear.1} parent=0
    _
  %s6 = ssub.s32 1, %s4
  %s7 = scalar_select 0, %s6, %s4
  $region1: #{concat_linear.1} parent=0
    #allocation2 [shape = 'u8[8192]{0}', space=vmem, size = 0x2000, scoped, tag = 'output window, operand 0, single buffered']
    #allocation3 [shape = 's32[1]{0}', space=sflag, size = 0x4, scoped, tag = 'scoped memory for concat_linear.1']
    %8 = vsyncpa [#allocation3], 0
    // Predicated region
    $region2: #{concat_linear.1} parent=1 // pred_check
      _
    $region3: #{concat_linear.1} parent=1 // pred_check_branch
      %10 = sbr.rel (0) target = $region5
    $region4: #{concat_linear.1} parent=1 // pred_region
      _
    $region5: #{concat_linear.1} parent=1 // pred_fallthru
      _
    // Predicated region
    $region6: #{concat_linear.1} parent=1 // pred_check
      _
    $region7: #{concat_linear.1} parent=1 // pred_check_branch
      %12 = sbr.rel (0) target = $region9
    $region8: #{concat_linear.1} parent=1 // pred_region
      _
    $region9: #{concat_linear.1} parent=1 // pred_fallthru
      _
    // Predicated region
    $region10: #{concat_linear.1} parent=1 // pred_check
      _
    $region11: #{concat_linear.1} parent=1 // pred_check_branch
      %14 = sbr.rel (0) target = $region13
    $region12: #{concat_linear.1} parent=1 // pred_region
      _
    $region13: #{concat_linear.1} parent=1 // pred_fallthru
      _
    %v15 = vld [vmem:[%s0] sm:$0xff]
    %v16 = vld [vmem:[%s0 + $0x8] sm:$0xff]
    %v17 = vld [vmem:[%s1] sm:$0xff]
    %v18 = vld [vmem:[%s1 + $0x8] sm:$0xff]
    %v19 = vld [vmem:[%s1 + $0x10] sm:$0xff]
    %v20 = vld [vmem:[%s1 + $0x18] sm:$0xff]
    %v21 = vld [vmem:[%s1 + $0x20] sm:$0xff]
    %v22 = vld [vmem:[%s1 + $0x28] sm:$0xff]
    %v23 = vld [vmem:[%s1 + $0x30] sm:$0xff]
    %v24 = vld [vmem:[%s1 + $0x38] sm:$0xff]
    %v25 = vld [vmem:[%s1 + $0x40] sm:$0xff]
    %v26 = vld [vmem:[%s1 + $0x48] sm:$0xff]
    %v27 = vld [vmem:[%s1 + $0x50] sm:$0xff]
    %v28 = vld [vmem:[%s1 + $0x58] sm:$0xff]
    %v29 = vld [vmem:[%s1 + $0x60] sm:$0xff]
    %v30 = vld [vmem:[%s1 + $0x68] sm:$0xff]
    %v31 = vld [vmem:[%s1 + $0x70] sm:$0xff]
    %v32 = vld [vmem:[%s1 + $0x78] sm:$0xff]
    %vm33 = vcmask 261120
    %v35 = vsel %vm33, %v15, 0
    %v38 = vsel %vm33, %v16, 0
    %v41 = vsel %vm33, %v17, 0
    %v44 = vsel %vm33, %v18, 0
    %v47 = vsel %vm33, %v19, 0
    %v50 = vsel %vm33, %v20, 0
    %v53 = vsel %vm33, %v21, 0
    %v56 = vsel %vm33, %v22, 0
    %v59 = vsel %vm33, %v23, 0
    %v62 = vsel %vm33, %v24, 0
    %v65 = vsel %vm33, %v25, 0
    %v68 = vsel %vm33, %v26, 0
    %v71 = vsel %vm33, %v27, 0
    %v74 = vsel %vm33, %v28, 0
    %v77 = vsel %vm33, %v29, 0
    %v80 = vsel %vm33, %v30, 0
    %v83 = vsel %vm33, %v31, 0
    %v86 = vsel %vm33, %v32, 0
    %88 = vmatprep.subr.mxu0 0.0
    %89 = vmatpush1.xpose.msra.mxu0 %v41
    %90 = vmatprep.subr.mxu0 0.0
    %91 = vmatpush1.xpose.msra.mxu0 %v44
    %92 = vmatprep.subr.mxu0 0.0
    %93 = vmatpush1.xpose.msra.mxu0 %v47
    %94 = vmatprep.subr.mxu0 0.0
    %95 = vmatpush1.xpose.msra.mxu0 %v50
    %96 = vmatprep.subr.mxu0 0.0
    %97 = vmatpush1.xpose.msra.mxu0 %v53
    %98 = vmatprep.subr.mxu0 0.0
    %99 = vmatpush1.xpose.msra.mxu0 %v56
    %100 = vmatprep.subr.mxu0 0.0
    %101 = vmatpush1.xpose.msra.mxu0 %v59
    %102 = vmatprep.subr.mxu0 0.0
    %103 = vmatpush1.xpose.msra.mxu0 %v62
    %104 = vmatprep.subr.mxu0 0.0
    %105 = vmatpush1.xpose.msra.mxu0 %v65
    %106 = vmatprep.subr.mxu0 0.0
    %107 = vmatpush1.xpose.msra.mxu0 %v68
    %108 = vmatprep.subr.mxu0 0.0
    %109 = vmatpush1.xpose.msra.mxu0 %v71
    %110 = vmatprep.subr.mxu0 0.0
    %111 = vmatpush1.xpose.msra.mxu0 %v74
    %112 = vmatprep.subr.mxu0 0.0
    %113 = vmatpush1.xpose.msra.mxu0 %v77
    %114 = vmatprep.subr.mxu0 0.0
    %115 = vmatpush1.xpose.msra.mxu0 %v80
    %116 = vmatprep.subr.mxu0 0.0
    %117 = vmatpush1.xpose.msra.mxu0 %v83
    %118 = vmatprep.subr.mxu0 0.0
    %119 = vmatpush1.xpose.msra.mxu0 %v86
    %120 = vmatprep.subr.mxu0 0.0
    %121 = vmatpush1.xpose.msra.mxu0 0.0
    %122 = vmatprep.subr.mxu0 0.0
    %123 = vmatpush1.xpose.msra.mxu0 0.0
    %124 = vmatprep.subr.mxu0 0.0
    %125 = vmatpush1.xpose.msra.mxu0 0.0
    %126 = vmatprep.subr.mxu0 0.0
    %127 = vmatpush1.xpose.msra.mxu0 0.0
    %128 = vmatprep.subr.mxu0 0.0
    %129 = vmatpush1.xpose.msra.mxu0 0.0
    %130 = vmatprep.subr.mxu0 0.0
    %131 = vmatpush1.xpose.msra.mxu0 0.0
    %132 = vmatprep.subr.mxu0 0.0
    %133 = vmatpush1.xpose.msra.mxu0 0.0
    %134 = vmatprep.subr.mxu0 0.0
    %135 = vmatpush1.xpose.msra.mxu0 0.0
    %136 = vmatprep.subr.mxu0 0.0
    %137 = vmatpush1.xpose.msra.mxu0 0.0
    %138 = vmatprep.subr.mxu0 0.0
    %139 = vmatpush1.xpose.msra.mxu0 0.0
    %140 = vmatprep.subr.mxu0 0.0
    %141 = vmatpush1.xpose.msra.mxu0 0.0
    %142 = vmatprep.subr.mxu0 0.0
    %143 = vmatpush1.xpose.msra.mxu0 0.0
    %144 = vmatprep.subr.mxu0 0.0
    %145 = vmatpush1.xpose.msra.mxu0 0.0
    %146 = vmatprep.subr.mxu0 0.0
    %147 = vmatpush1.xpose.msra.mxu0 0.0
    %148 = vmatprep.subr.mxu0 0.0
    %149 = vmatpush1.xpose.msra.mxu0 0.0
    %150 = vmatprep.subr.mxu0 0.0
    %151 = vmatpush1.xpose.msra.mxu0 0.0
    %152 = vmatprep.mubr.f32.mxu0 0.0
    %153 = vmatmul.mubr.f32.gmra.mrb[0].mxu0 %v35
    %v154 = vpop.f32.mrb[0].mxu0
    %v155 = vadd.f32 0.0, %v154
    %v156 = vpop.f32.mrb[0].mxu0
    %157 = vmatprep.mubr.f32.mxu0 0.0
    %158 = vmatmul.mubr.f32.gmra.mrb[0].mxu0 %v38
    %v159 = vpop.f32.mrb[0].mxu0
    %v160 = vadd.f32 0.0, %v159
    %v161 = vpop.f32.mrb[0].mxu0
    %162 = vdwg.mxu0
    %v163 = vld [vmem:[%s2] sm:$0x1]
    %v164 = vld [vmem:[%s2 + $0x1] sm:$0x1]
    %v167 = vlaneseq
    %v168 = vshrl.u32 %v167, 7
    %v169 = vsub.s32 0, %v168
    %v170 = vrot.slane %v163, %v169
    %v171 = vlaneseq
    %v172 = vshrl.u32 %v171, 7
    %v173 = vsub.s32 0, %v172
    %v174 = vrot.slane %v164, %v173
    %v177 = vadd.f32 %v155, %v170
    %v178 = vadd.f32 %v160, %v174
    %179 = vst [vmem:[#allocation2] sm:$0xff] %v177
    %180 = vst [vmem:[#allocation2 + $0x8] sm:$0xff] %v178
    // Predicated region
    $region14: #{concat_linear.1} parent=1 // pred_check
      _
    $region15: #{concat_linear.1} parent=1 // pred_check_branch
      %182 = sbr.rel (0) target = $region17
    $region16: #{concat_linear.1} parent=1 // pred_region
      %s184 = ssub.s32 256, 256
      %185 = vsyncadd [#allocation3], %s184
      %s186 = sshll.u32 [#allocation2], 4
      %s187 = int_to_ptr.vmem [resolvable:$true] %s186
      %192 = dma.vmem_to_hbm [thread:$0]  %s187, 256, %s3, [#allocation3], 128, 128, 8
    $region17: #{concat_linear.1} parent=1 // pred_fallthru
      _
    // Predicated region
    $region18: #{concat_linear.1} parent=1 // pred_check
      _
    $region19: #{concat_linear.1} parent=1 // pred_check_branch
      %194 = sbr.rel (0) target = $region21
    $region20: #{concat_linear.1} parent=1 // pred_region
      %195 = dma.done [#allocation3], 256
    $region21: #{concat_linear.1} parent=1 // pred_fallthru
      _
    %196 = vsyncpa [#allocation3], 1

</llo_original>
